<compile_context>
chip_gen: v6e
topology: v6e:2x2x1
jax: 0.10.0
libtpu: 0.0.40
codegen_flags: <defaults>
</compile_context>

<pallas_src>
import jax
import jax.numpy as jnp
from jax import lax
from jax.experimental import pallas as pl
from jax.experimental.pallas import tpu as pltpu


def relation_kernel(obs_ref, w1_ref, b1_ref, w2_ref, b2_ref, skill_ref, rel_ref):
    """One grid step == one row tile (flattened batch*agents rows).

    obs_ref   : (TR, D_obs)  VMEM
    w1_ref    : (D_obs, H)   VMEM (resident)
    b1_ref    : (1, H)       VMEM (resident)
    w2_ref    : (H, L)       VMEM (resident)
    b2_ref    : (1, L)       VMEM (resident)
    skill_ref : (K, L)       VMEM (resident)  -- latent_skill, NOT transposed
    rel_ref   : (TR, K)      VMEM
    """
    obs = obs_ref[...]                                            # (TR, D_obs)

    # --- ObsEncode MLP: two MXU matmuls + VPU relu over the whole row tile ---
    h = jnp.dot(obs, w1_ref[...], preferred_element_type=jnp.float32) + b1_ref[...]
    h = jnp.maximum(h, 0.0)                                       # (TR, H)
    emb = jnp.dot(h, w2_ref[...], preferred_element_type=jnp.float32) + b2_ref[...]
    # emb: (TR, L)

    # --- relation head: emb @ latent_skill^T, contracting L (no transpose needed) ---
    logits = lax.dot_general(
        emb, skill_ref[...],
        (((1,), (1,)), ((), ())),
        preferred_element_type=jnp.float32,
    )                                                             # (TR, K)

    # --- softmax over skills (f32 throughout; reciprocal on the EUP slot) ---
    m = jnp.max(logits, axis=-1, keepdims=True)
    e = jnp.exp(logits - m)
    denom = jnp.sum(e, axis=-1, keepdims=True)
    rel_ref[...] = (e * pl.reciprocal(denom, approx=True)).astype(rel_ref.dtype)


def _round_up(x, m):
    return ((x + m - 1) // m) * m


def relation_forward(obs, latent_skill, params, *, row_tile=512):
    """rel = Relation(latent_dim, resample_num).forward(task, obs, latent_skill)."""
    B, N, D_obs = obs.shape
    K, L = latent_skill.shape
    H = params["w1"].shape[1]

    # Flatten batch*agents into one row dimension; tile it in large blocks.
    R = B * N
    tr = min(row_tile, _round_up(R, 8))        # sublane-aligned row tile
    R_pad = _round_up(R, tr)

    obs_flat = obs.reshape(R, D_obs)
    if R_pad != R:
        obs_flat = jnp.pad(obs_flat, ((0, R_pad - R), (0, 0)))

    b1 = params["b1"].reshape(1, H)
    b2 = params["b2"].reshape(1, L)

    grid = (R_pad // tr,)
    grid_spec = pltpu.PrefetchScalarGridSpec(
        num_scalar_prefetch=0,
        grid=grid,
        in_specs=[
            pl.BlockSpec((tr, D_obs), lambda r: (r, 0)),          # obs rows (tiled)
            pl.BlockSpec((D_obs, H), lambda r: (0, 0)),           # w1 (resident)
            pl.BlockSpec((1, H), lambda r: (0, 0)),               # b1
            pl.BlockSpec((H, L), lambda r: (0, 0)),               # w2
            pl.BlockSpec((1, L), lambda r: (0, 0)),               # b2
            pl.BlockSpec((K, L), lambda r: (0, 0)),               # latent_skill (K, L)
        ],
        out_specs=pl.BlockSpec((tr, K), lambda r: (r, 0)),
    )

    rel_flat = pl.pallas_call(
        relation_kernel,
        out_shape=jax.ShapeDtypeStruct((R_pad, K), jnp.float32),
        grid_spec=grid_spec,
        compiler_params=pltpu.CompilerParams(
            dimension_semantics=("parallel",),   # row tiles shard across TCs on v7x
        ),
    )(obs_flat, params["w1"], b1, params["w2"], b2, latent_skill)

    return rel_flat[:R].reshape(B, N, K)


def relation_reference(obs, latent_skill, params):
    """Pure-JAX reference of the same forward pass."""
    h = jnp.maximum(jnp.einsum("bnd,dh->bnh", obs, params["w1"]) + params["b1"], 0.0)
    emb = jnp.einsum("bnh,hl->bnl", h, params["w2"]) + params["b2"]
    logits = jnp.einsum("bnl,kl->bnk", emb, latent_skill)
    return jax.nn.softmax(logits, axis=-1)


def init_params(key, d_obs, hidden, latent_dim):
    k1, k2 = jax.random.split(key)
    scale1 = 1.0 / jnp.sqrt(d_obs)
    scale2 = 1.0 / jnp.sqrt(hidden)
    return {
        "w1": jax.random.uniform(k1, (d_obs, hidden), jnp.float32, -scale1, scale1),
        "b1": jnp.zeros((hidden,), jnp.float32),
        "w2": jax.random.uniform(k2, (hidden, latent_dim), jnp.float32, -scale2, scale2),
        "b2": jnp.zeros((latent_dim,), jnp.float32),
    }


if __name__ == "__main__":
    # Small shapes consistent with the module:
    #   batch B=2, agents N=8, obs_dim=16, hidden_dim=32 (fixed in Relation.__init__),
    #   latent_dim=32, number of skills K=4 (resample_num unused in default path).
    B, N, D_OBS = 2, 8, 16
    HIDDEN = 32          # Relation.hidden_dim
    LATENT = 32          # latent_dim
    K_SKILL = 4

    key = jax.random.PRNGKey(0)
    k_obs, k_skill, k_par = jax.random.split(key, 3)

    obs = jax.random.normal(k_obs, (B, N, D_OBS), jnp.float32)
    latent_skill = jax.random.normal(k_skill, (K_SKILL, LATENT), jnp.float32)
    params = init_params(k_par, D_OBS, HIDDEN, LATENT)

    rel = relation_forward(obs, latent_skill, params)
    rel = jax.block_until_ready(rel)

    ref = relation_reference(obs, latent_skill, params)
    assert rel.shape == (B, N, K_SKILL)
    # approx reciprocal in the softmax denominator -> allow ~1e-3-level error.
    assert jnp.allclose(rel, ref, atol=2e-3, rtol=2e-3), "mismatch vs reference"

    print("KERNEL_OK")
</pallas_src>

<mosaic_0001>
module attributes {stable_mosaic.version = 11 : i64} {
  func.func @relation_kernel(%arg0: i32, %arg1: memref<16x16xf32, #tpu.memory_space<vmem>>, %arg2: memref<16x32xf32, #tpu.memory_space<vmem>>, %arg3: memref<1x32xf32, #tpu.memory_space<vmem>>, %arg4: memref<32x32xf32, #tpu.memory_space<vmem>>, %arg5: memref<1x32xf32, #tpu.memory_space<vmem>>, %arg6: memref<4x32xf32, #tpu.memory_space<vmem>>, %arg7: memref<16x4xf32, #tpu.memory_space<vmem>>) attributes {dimension_semantics = [#tpu.dimension_semantics<parallel>], iteration_bounds = array<i64: 1>, scalar_prefetch = 0 : i64, scratch_operands = 0 : i64, tpu.core_type = #tpu.core_type<tc>, window_params = [{transform_indices = @transform_0, window_bounds = array<i64: 16, 16>}, {pipeline_mode = #tpu.pipeline_mode<synchronous>, transform_indices = @transform_1, window_bounds = array<i64: 16, 32>}, {pipeline_mode = #tpu.pipeline_mode<synchronous>, transform_indices = @transform_2, window_bounds = array<i64: 1, 32>}, {pipeline_mode = #tpu.pipeline_mode<synchronous>, transform_indices = @transform_3, window_bounds = array<i64: 32, 32>}, {pipeline_mode = #tpu.pipeline_mode<synchronous>, transform_indices = @transform_4, window_bounds = array<i64: 1, 32>}, {pipeline_mode = #tpu.pipeline_mode<synchronous>, transform_indices = @transform_5, window_bounds = array<i64: 4, 32>}, {transform_indices = @transform_6, window_bounds = array<i64: 16, 4>}]} {
    %c0 = arith.constant 0 : index
    %c0_0 = arith.constant 0 : index
    %0 = vector.load %arg1[%c0, %c0_0] : memref<16x16xf32, #tpu.memory_space<vmem>>, vector<16x16xf32>
    %c0_1 = arith.constant 0 : index
    %c0_2 = arith.constant 0 : index
    %1 = vector.load %arg2[%c0_1, %c0_2] : memref<16x32xf32, #tpu.memory_space<vmem>>, vector<16x32xf32>
    %cst = arith.constant dense<0.000000e+00> : vector<16x32xf32>
    %2 = tpu.matmul %0, %1, %cst {dimension_numbers = #tpu.dot_dimension_numbers<[1], [0], [0], [1], [0, 0, 1, 1], [], []>} : vector<16x16xf32>, vector<16x32xf32>, vector<16x32xf32> -> vector<16x32xf32>
    %c0_3 = arith.constant 0 : index
    %c0_4 = arith.constant 0 : index
    %3 = vector.load %arg3[%c0_3, %c0_4] : memref<1x32xf32, #tpu.memory_space<vmem>>, vector<1x32xf32>
    %4 = vector.broadcast %3 : vector<1x32xf32> to vector<16x32xf32>
    %5 = arith.addf %2, %4 : vector<16x32xf32>
    %cst_5 = arith.constant 0.000000e+00 : f32
    %6 = vector.broadcast %cst_5 : f32 to vector<16x32xf32>
    %7 = arith.maximumf %5, %6 : vector<16x32xf32>
    %c0_6 = arith.constant 0 : index
    %c0_7 = arith.constant 0 : index
    %8 = vector.load %arg4[%c0_6, %c0_7] : memref<32x32xf32, #tpu.memory_space<vmem>>, vector<32x32xf32>
    %cst_8 = arith.constant dense<0.000000e+00> : vector<16x32xf32>
    %9 = tpu.matmul %7, %8, %cst_8 {dimension_numbers = #tpu.dot_dimension_numbers<[1], [0], [0], [1], [0, 0, 1, 1], [], []>} : vector<16x32xf32>, vector<32x32xf32>, vector<16x32xf32> -> vector<16x32xf32>
    %c0_9 = arith.constant 0 : index
    %c0_10 = arith.constant 0 : index
    %10 = vector.load %arg5[%c0_9, %c0_10] : memref<1x32xf32, #tpu.memory_space<vmem>>, vector<1x32xf32>
    %11 = vector.broadcast %10 : vector<1x32xf32> to vector<16x32xf32>
    %12 = arith.addf %9, %11 : vector<16x32xf32>
    %c0_11 = arith.constant 0 : index
    %c0_12 = arith.constant 0 : index
    %13 = vector.load %arg6[%c0_11, %c0_12] : memref<4x32xf32, #tpu.memory_space<vmem>>, vector<4x32xf32>
    %cst_13 = arith.constant dense<0.000000e+00> : vector<16x4xf32>
    %14 = tpu.matmul %12, %13, %cst_13 {dimension_numbers = #tpu.dot_dimension_numbers<[1], [1], [0], [0], [0, 0, 1, 0], [], []>} : vector<16x32xf32>, vector<4x32xf32>, vector<16x4xf32> -> vector<16x4xf32>
    %cst_14 = arith.constant dense<0xFF800000> : vector<16xf32>
    %15 = vector.multi_reduction <maximumf>, %14, %cst_14 [1] : vector<16x4xf32> to vector<16xf32>
    %16 = vector.shape_cast %15 : vector<16xf32> to vector<16x1xf32>
    %17 = vector.broadcast %16 : vector<16x1xf32> to vector<16x4xf32>
    %18 = arith.subf %14, %17 : vector<16x4xf32>
    %19 = math.exp %18 : vector<16x4xf32>
    %cst_15 = arith.constant dense<0.000000e+00> : vector<16xf32>
    %20 = vector.multi_reduction <add>, %19, %cst_15 [1] : vector<16x4xf32> to vector<16xf32>
    %21 = vector.shape_cast %20 : vector<16xf32> to vector<16x1xf32>
    %22 = tpu.reciprocal %21 {approx = true} : vector<16x1xf32> -> vector<16x1xf32>
    %23 = vector.broadcast %22 : vector<16x1xf32> to vector<16x4xf32>
    %24 = arith.mulf %19, %23 : vector<16x4xf32>
    %c0_16 = arith.constant 0 : index
    %c0_17 = arith.constant 0 : index
    %25 = vector.load %arg7[%c0_16, %c0_17] : memref<16x4xf32, #tpu.memory_space<vmem>>, vector<16x4xf32>
    tpu.vector_store %arg7[%c0_16, %c0_17], %24 {strides = array<i32>} : memref<16x4xf32, #tpu.memory_space<vmem>>, vector<16x4xf32>,
    return
  }
  func.func @transform_0(%arg0: i32) -> (i32, i32) {
    %c0_i32 = arith.constant 0 : i32
    %c0_i32_0 = arith.constant 0 : i32
    return %arg0, %c0_i32 : i32, i32
  }
  func.func @transform_1(%arg0: i32) -> (i32, i32) {
    %c0_i32 = arith.constant 0 : i32
    %c0_i32_0 = arith.constant 0 : i32
    %c0_i32_1 = arith.constant 0 : i32
    return %c0_i32, %c0_i32_0 : i32, i32
  }
  func.func @transform_2(%arg0: i32) -> (i32, i32) {
    %c0_i32 = arith.constant 0 : i32
    %c0_i32_0 = arith.constant 0 : i32
    %c0_i32_1 = arith.constant 0 : i32
    return %c0_i32, %c0_i32_0 : i32, i32
  }
  func.func @transform_3(%arg0: i32) -> (i32, i32) {
    %c0_i32 = arith.constant 0 : i32
    %c0_i32_0 = arith.constant 0 : i32
    %c0_i32_1 = arith.constant 0 : i32
    return %c0_i32, %c0_i32_0 : i32, i32
  }
  func.func @transform_4(%arg0: i32) -> (i32, i32) {
    %c0_i32 = arith.constant 0 : i32
    %c0_i32_0 = arith.constant 0 : i32
    %c0_i32_1 = arith.constant 0 : i32
    return %c0_i32, %c0_i32_0 : i32, i32
  }
  func.func @transform_5(%arg0: i32) -> (i32, i32) {
    %c0_i32 = arith.constant 0 : i32
    %c0_i32_0 = arith.constant 0 : i32
    %c0_i32_1 = arith.constant 0 : i32
    return %c0_i32, %c0_i32_0 : i32, i32
  }
  func.func @transform_6(%arg0: i32) -> (i32, i32) {
    %c0_i32 = arith.constant 0 : i32
    %c0_i32_0 = arith.constant 0 : i32
    return %arg0, %c0_i32 : i32, i32
  }
}

</mosaic_0001>

<llo_original>
// kernel: tpu_custom_call.1
$region0: #{tpu_custom_call.1}
  #allocation0 [shape = 'u32[]', space=smem, size = 0x4, offset = 0x4, fixed_abs, tag = 'smem constant byte address 0x4 - core index']
  #allocation1 [shape = 'u32[144,128]{1,0:T(1,128)}', space=vmem, size = 0x12000, scoped, tag = 'internal scratch']
  %s0 = inlined_call_operand.hbm [shape: f32[16,16], index: 0, kind: input, shape index: {}]
  %s1 = inlined_call_operand.hbm [shape: f32[16,32], index: 1, kind: input, shape index: {}]
  %s2 = inlined_call_operand.vmem [shape: f32[1,32], index: 2, kind: input, shape index: {}]
  %s3 = inlined_call_operand.hbm [shape: f32[32,32], index: 3, kind: input, shape index: {}]
  %s4 = inlined_call_operand.vmem [shape: f32[1,32], index: 4, kind: input, shape index: {}]
  %s5 = inlined_call_operand.vmem [shape: f32[4,32], index: 5, kind: input, shape index: {}]
  %s6 = inlined_call_operand.vmem [shape: f32[16,4], index: 6, kind: output, shape index: {}]
  %s7 = sld [smem:[#allocation0]]
  $region46: #{tpu_custom_call.1} parent=0
    _
  %s9 = ssub.s32 1, %s7
  %s10 = scalar_select 0, %s9, %s7
  $region1: #{tpu_custom_call.1} parent=0
    #allocation2 [shape = 'u8[8192]{0}', space=vmem, size = 0x2000, scoped, tag = 'input window, operand 0, single buffered']
    #allocation3 [shape = 's32[1]{0}', space=sflag, size = 0x4, scoped, tag = 'scoped memory for tpu_custom_call.1']
    #allocation4 [shape = 'u8[8192]{0}', space=vmem, size = 0x2000, scoped, tag = 'input window, operand 1, single buffered']
    #allocation5 [shape = 's32[1]{0}', space=sflag, size = 0x4, scoped, tag = 'scoped memory for tpu_custom_call.1']
    #allocation6 [shape = 'u8[16384]{0}', space=vmem, size = 0x4000, scoped, tag = 'input window, operand 3, single buffered']
    %11 = vsyncpa [#allocation3], 0
    %12 = vsyncpa [#allocation5], 0
    // Predicated region
    $region2: #{tpu_custom_call.1} parent=1 // pred_check
      _
    $region3: #{tpu_custom_call.1} parent=1 // pred_check_branch
      %14 = sbr.rel (0) target = $region5
    $region4: #{tpu_custom_call.1} parent=1 // pred_region
      %s16 = ssub.s32 256, 256
      %17 = vsyncadd [#allocation3], %s16
      %s18 = sshll.u32 [#allocation2], 4
      %s19 = int_to_ptr.vmem [resolvable:$true] %s18
      %24 = dma.hbm_to_vmem [thread:$0]  %s0, 256, %s19, [#allocation3], 128, 128, 8
    $region5: #{tpu_custom_call.1} parent=1 // pred_fallthru
      _
    // Predicated region
    $region6: #{tpu_custom_call.1} parent=1 // pred_check
      _
    $region7: #{tpu_custom_call.1} parent=1 // pred_check_branch
      %26 = sbr.rel (0) target = $region9
    $region8: #{tpu_custom_call.1} parent=1 // pred_region
      %s28 = ssub.s32 256, 256
      %29 = vsyncadd [#allocation5], %s28
      %s30 = sshll.u32 [#allocation4], 4
      %s31 = int_to_ptr.vmem [resolvable:$true] %s30
      %36 = dma.hbm_to_vmem [thread:$0]  %s1, 256, %s31, [#allocation5], 128, 128, 8
    $region9: #{tpu_custom_call.1} parent=1 // pred_fallthru
      _
    // Predicated region
    $region10: #{tpu_custom_call.1} parent=1 // pred_check
      _
    $region11: #{tpu_custom_call.1} parent=1 // pred_check_branch
      %38 = sbr.rel (0) target = $region13
    $region12: #{tpu_custom_call.1} parent=1 // pred_region
      _
    $region13: #{tpu_custom_call.1} parent=1 // pred_fallthru
      _
    // Predicated region
    $region14: #{tpu_custom_call.1} parent=1 // pred_check
      _
    $region15: #{tpu_custom_call.1} parent=1 // pred_check_branch
      %40 = sbr.rel (0) target = $region17
    $region16: #{tpu_custom_call.1} parent=1 // pred_region
      %s42 = ssub.s32 512, 512
      %43 = vsyncadd [#allocation5], %s42
      %s44 = sshll.u32 [#allocation6], 4
      %s45 = int_to_ptr.vmem [resolvable:$true] %s44
      %50 = dma.hbm_to_vmem [thread:$0]  %s3, 512, %s45, [#allocation5], 128, 128, 8
    $region17: #{tpu_custom_call.1} parent=1 // pred_fallthru
      _
    // Predicated region
    $region18: #{tpu_custom_call.1} parent=1 // pred_check
      _
    $region19: #{tpu_custom_call.1} parent=1 // pred_check_branch
      %52 = sbr.rel (0) target = $region21
    $region20: #{tpu_custom_call.1} parent=1 // pred_region
      _
    $region21: #{tpu_custom_call.1} parent=1 // pred_fallthru
      _
    // Predicated region
    $region22: #{tpu_custom_call.1} parent=1 // pred_check
      _
    $region23: #{tpu_custom_call.1} parent=1 // pred_check_branch
      %54 = sbr.rel (0) target = $region25
    $region24: #{tpu_custom_call.1} parent=1 // pred_region
      _
    $region25: #{tpu_custom_call.1} parent=1 // pred_fallthru
      _
    // Predicated region
    $region26: #{tpu_custom_call.1} parent=1 // pred_check
      _
    $region27: #{tpu_custom_call.1} parent=1 // pred_check_branch
      %56 = sbr.rel (0) target = $region29
    $region28: #{tpu_custom_call.1} parent=1 // pred_region
      %57 = dma.done [#allocation3], 256
    $region29: #{tpu_custom_call.1} parent=1 // pred_fallthru
      _
    // Predicated region
    $region30: #{tpu_custom_call.1} parent=1 // pred_check
      _
    $region31: #{tpu_custom_call.1} parent=1 // pred_check_branch
      %59 = sbr.rel (0) target = $region33
    $region32: #{tpu_custom_call.1} parent=1 // pred_region
      %60 = dma.done [#allocation5], 256
    $region33: #{tpu_custom_call.1} parent=1 // pred_fallthru
      _
    // Predicated region
    $region34: #{tpu_custom_call.1} parent=1 // pred_check
      _
    $region35: #{tpu_custom_call.1} parent=1 // pred_check_branch
      %62 = sbr.rel (0) target = $region37
    $region36: #{tpu_custom_call.1} parent=1 // pred_region
      %63 = dma.done [#allocation5], 512
    $region37: #{tpu_custom_call.1} parent=1 // pred_fallthru
      _
    %v64 = vld [vmem:[#allocation2] sm:$0xff]
    %v65 = vld [vmem:[#allocation2 + $0x8] sm:$0xff]
    %v66 = vld [vmem:[#allocation4] sm:$0xff]
    %v67 = vld [vmem:[#allocation4 + $0x8] sm:$0xff]
    %v68 = vld [vmem:[%s2] sm:$0x1]
    %v70 = vlaneseq
    %v71 = vshrl.u32 %v70, 7
    %v72 = vsub.s32 0, %v71
    %v73 = vrot.slane %v68, %v72
    %vm75 = vcmask 130048
    %v77 = vsel %vm75, %v64, 0
    %v80 = vsel %vm75, %v65, 0
    %82 = vmatprep.subr.mxu0 0.0
    %83 = vmatpush1.msra.mxu0 0.0
    %84 = vmatprep.subr.mxu0 0.0
    %85 = vmatpush1.msra.mxu0 0.0
    %86 = vmatprep.subr.mxu0 0.0
    %87 = vmatpush1.msra.mxu0 0.0
    %88 = vmatprep.subr.mxu0 0.0
    %89 = vmatpush1.msra.mxu0 0.0
    %90 = vmatprep.subr.mxu0 0.0
    %91 = vmatpush1.msra.mxu0 0.0
    %92 = vmatprep.subr.mxu0 0.0
    %93 = vmatpush1.msra.mxu0 0.0
    %94 = vmatprep.subr.mxu0 0.0
    %95 = vmatpush1.msra.mxu0 0.0
    %96 = vmatprep.subr.mxu0 0.0
    %97 = vmatpush1.msra.mxu0 0.0
    %98 = vmatprep.subr.mxu0 0.0
    %99 = vmatpush1.msra.mxu0 0.0
    %100 = vmatprep.subr.mxu0 0.0
    %101 = vmatpush1.msra.mxu0 0.0
    %102 = vmatprep.subr.mxu0 0.0
    %103 = vmatpush1.msra.mxu0 0.0
    %104 = vmatprep.subr.mxu0 0.0
    %105 = vmatpush1.msra.mxu0 0.0
    %106 = vmatprep.subr.mxu0 0.0
    %107 = vmatpush1.msra.mxu0 0.0
    %108 = vmatprep.subr.mxu0 0.0
    %109 = vmatpush1.msra.mxu0 0.0
    %110 = vmatprep.subr.mxu0 0.0
    %111 = vmatpush1.msra.mxu0 %v67
    %112 = vmatprep.subr.mxu0 0.0
    %113 = vmatpush1.msra.mxu0 %v66
    %114 = vmatprep.subr.mxu0 0.0
    %115 = vmatpush2.msra.mxu0 0.0
    %116 = vmatprep.subr.mxu0 0.0
    %117 = vmatpush2.msra.mxu0 0.0
    %118 = vmatprep.subr.mxu0 0.0
    %119 = vmatpush2.msra.mxu0 0.0
    %120 = vmatprep.subr.mxu0 0.0
    %121 = vmatpush2.msra.mxu0 0.0
    %122 = vmatprep.subr.mxu0 0.0
    %123 = vmatpush2.msra.mxu0 0.0
    %124 = vmatprep.subr.mxu0 0.0
    %125 = vmatpush2.msra.mxu0 0.0
    %126 = vmatprep.subr.mxu0 0.0
    %127 = vmatpush2.msra.mxu0 0.0
    %128 = vmatprep.subr.mxu0 0.0
    %129 = vmatpush2.msra.mxu0 0.0
    %130 = vmatprep.subr.mxu0 0.0
    %131 = vmatpush2.msra.mxu0 0.0
    %132 = vmatprep.subr.mxu0 0.0
    %133 = vmatpush2.msra.mxu0 0.0
    %134 = vmatprep.subr.mxu0 0.0
    %135 = vmatpush2.msra.mxu0 0.0
    %136 = vmatprep.subr.mxu0 0.0
    %137 = vmatpush2.msra.mxu0 0.0
    %138 = vmatprep.subr.mxu0 0.0
    %139 = vmatpush2.msra.mxu0 0.0
    %140 = vmatprep.subr.mxu0 0.0
    %141 = vmatpush2.msra.mxu0 0.0
    %142 = vmatprep.subr.mxu0 0.0
    %143 = vmatpush2.msra.mxu0 0.0
    %144 = vmatprep.subr.mxu0 0.0
    %145 = vmatpush2.msra.mxu0 0.0
    %146 = vmatprep.mubr.f32.mxu0 0.0
    %147 = vmatmul.mubr.f32.gmra.mxu0 %v77
    %v148 = vpop.f32.mrf.mxu0
    %v149 = vadd.f32 %v73, %v148
    %v150 = vpop.f32.mrf.mxu0
    %151 = vmatprep.mubr.f32.mxu0 0.0
    %152 = vmatmul.mubr.f32.gmra.mxu0 %v80
    %v153 = vpop.f32.mrf.mxu0
    %v154 = vadd.f32 %v73, %v153
    %v155 = vpop.f32.mrf.mxu0
    %156 = vdwg.mxu0
    %v157 = vmax.f32 %v149, 0.0
    %v158 = vmax.f32 %v154, 0.0
    %v159 = vld [vmem:[#allocation6] sm:$0xff]
    %v160 = vld [vmem:[#allocation6 + $0x8] sm:$0xff]
    %v161 = vld [vmem:[#allocation6 + $0x10] sm:$0xff]
    %v162 = vld [vmem:[#allocation6 + $0x18] sm:$0xff]
    %v163 = vld [vmem:[%s4] sm:$0x1]
    %v165 = vlaneseq
    %v166 = vshrl.u32 %v165, 7
    %v167 = vsub.s32 0, %v166
    %v168 = vrot.slane %v163, %v167
    %vm170 = vcmask 261120
    %v172 = vsel %vm170, %v157, 0
    %v175 = vsel %vm170, %v158, 0
    %177 = vmatprep.subr.mxu0 0.0
    %178 = vmatpush1.msra.mxu0 0.0
    %179 = vmatprep.subr.mxu0 0.0
    %180 = vmatpush1.msra.mxu0 0.0
    %181 = vmatprep.subr.mxu0 0.0
    %182 = vmatpush1.msra.mxu0 0.0
    %183 = vmatprep.subr.mxu0 0.0
    %184 = vmatpush1.msra.mxu0 0.0
    %185 = vmatprep.subr.mxu0 0.0
    %186 = vmatpush1.msra.mxu0 0.0
    %187 = vmatprep.subr.mxu0 0.0
    %188 = vmatpush1.msra.mxu0 0.0
    %189 = vmatprep.subr.mxu0 0.0
    %190 = vmatpush1.msra.mxu0 0.0
    %191 = vmatprep.subr.mxu0 0.0
    %192 = vmatpush1.msra.mxu0 0.0
    %193 = vmatprep.subr.mxu0 0.0
    %194 = vmatpush1.msra.mxu0 0.0
    %195 = vmatprep.subr.mxu0 0.0
    %196 = vmatpush1.msra.mxu0 0.0
    %197 = vmatprep.subr.mxu0 0.0
    %198 = vmatpush1.msra.mxu0 0.0
    %199 = vmatprep.subr.mxu0 0.0
    %200 = vmatpush1.msra.mxu0 0.0
    %201 = vmatprep.subr.mxu0 0.0
    %202 = vmatpush1.msra.mxu0 %v162
    %203 = vmatprep.subr.mxu0 0.0
    %204 = vmatpush1.msra.mxu0 %v161
    %205 = vmatprep.subr.mxu0 0.0
    %206 = vmatpush1.msra.mxu0 %v160
    %207 = vmatprep.subr.mxu0 0.0
    %208 = vmatpush1.msra.mxu0 %v159
    %209 = vmatprep.subr.mxu0 0.0
    %210 = vmatpush2.msra.mxu0 0.0
    %211 = vmatprep.subr.mxu0 0.0
    %212 = vmatpush2.msra.mxu0 0.0
    %213 = vmatprep.subr.mxu0 0.0
    %214 = vmatpush2.msra.mxu0 0.0
    %215 = vmatprep.subr.mxu0 0.0
    %216 = vmatpush2.msra.mxu0 0.0
    %217 = vmatprep.subr.mxu0 0.0
    %218 = vmatpush2.msra.mxu0 0.0
    %219 = vmatprep.subr.mxu0 0.0
    %220 = vmatpush2.msra.mxu0 0.0
    %221 = vmatprep.subr.mxu0 0.0
    %222 = vmatpush2.msra.mxu0 0.0
    %223 = vmatprep.subr.mxu0 0.0
    %224 = vmatpush2.msra.mxu0 0.0
    %225 = vmatprep.subr.mxu0 0.0
    %226 = vmatpush2.msra.mxu0 0.0
    %227 = vmatprep.subr.mxu0 0.0
    %228 = vmatpush2.msra.mxu0 0.0
    %229 = vmatprep.subr.mxu0 0.0
    %230 = vmatpush2.msra.mxu0 0.0
    %231 = vmatprep.subr.mxu0 0.0
    %232 = vmatpush2.msra.mxu0 0.0
    %233 = vmatprep.subr.mxu0 0.0
    %234 = vmatpush2.msra.mxu0 0.0
    %235 = vmatprep.subr.mxu0 0.0
    %236 = vmatpush2.msra.mxu0 0.0
    %237 = vmatprep.subr.mxu0 0.0
    %238 = vmatpush2.msra.mxu0 0.0
    %239 = vmatprep.subr.mxu0 0.0
    %240 = vmatpush2.msra.mxu0 0.0
    %241 = vmatprep.mubr.f32.mxu0 0.0
    %242 = vmatmul.mubr.f32.gmra.mxu0 %v172
    %v243 = vpop.f32.mrf.mxu0
    %v244 = vadd.f32 %v168, %v243
    %v245 = vpop.f32.mrf.mxu0
    %246 = vmatprep.mubr.f32.mxu0 0.0
    %247 = vmatmul.mubr.f32.gmra.mxu0 %v175
    %v248 = vpop.f32.mrf.mxu0
    %v249 = vadd.f32 %v168, %v248
    %v250 = vpop.f32.mrf.mxu0
    %251 = vdwg.mxu0
    %v252 = vld [vmem:[%s5] sm:$0xf]
    %v254 = vsel %vm170, %v244, 0
    %v257 = vsel %vm170, %v249, 0
    %v260 = vsel %vm170, %v252, 0
    %262 = vmatprep.subr.mxu0 0.0
    %263 = vmatpush1.xpose.msra.mxu0 0.0
    %264 = vmatprep.subr.mxu0 0.0
    %265 = vmatpush1.xpose.msra.mxu0 0.0
    %266 = vmatprep.subr.mxu0 0.0
    %267 = vmatpush1.xpose.msra.mxu0 0.0
    %268 = vmatprep.subr.mxu0 0.0
    %269 = vmatpush1.xpose.msra.mxu0 0.0
    %270 = vmatprep.subr.mxu0 0.0
    %271 = vmatpush1.xpose.msra.mxu0 0.0
    %272 = vmatprep.subr.mxu0 0.0
    %273 = vmatpush1.xpose.msra.mxu0 0.0
    %274 = vmatprep.subr.mxu0 0.0
    %275 = vmatpush1.xpose.msra.mxu0 0.0
    %276 = vmatprep.subr.mxu0 0.0
    %277 = vmatpush1.xpose.msra.mxu0 0.0
    %278 = vmatprep.subr.mxu0 0.0
    %279 = vmatpush1.xpose.msra.mxu0 0.0
    %280 = vmatprep.subr.mxu0 0.0
    %281 = vmatpush1.xpose.msra.mxu0 0.0
    %282 = vmatprep.subr.mxu0 0.0
    %283 = vmatpush1.xpose.msra.mxu0 0.0
    %284 = vmatprep.subr.mxu0 0.0
    %285 = vmatpush1.xpose.msra.mxu0 0.0
    %286 = vmatprep.subr.mxu0 0.0
    %287 = vmatpush1.xpose.msra.mxu0 0.0
    %288 = vmatprep.subr.mxu0 0.0
    %289 = vmatpush1.xpose.msra.mxu0 0.0
    %290 = vmatprep.subr.mxu0 0.0
    %291 = vmatpush1.xpose.msra.mxu0 0.0
    %292 = vmatprep.subr.mxu0 0.0
    %293 = vmatpush1.xpose.msra.mxu0 %v260
    %294 = vmatprep.subr.mxu0 0.0
    %295 = vmatpush2.xpose.msra.mxu0 0.0
    %296 = vmatprep.subr.mxu0 0.0
    %297 = vmatpush2.xpose.msra.mxu0 0.0
    %298 = vmatprep.subr.mxu0 0.0
    %299 = vmatpush2.xpose.msra.mxu0 0.0
    %300 = vmatprep.subr.mxu0 0.0
    %301 = vmatpush2.xpose.msra.mxu0 0.0
    %302 = vmatprep.subr.mxu0 0.0
    %303 = vmatpush2.xpose.msra.mxu0 0.0
    %304 = vmatprep.subr.mxu0 0.0
    %305 = vmatpush2.xpose.msra.mxu0 0.0
    %306 = vmatprep.subr.mxu0 0.0
    %307 = vmatpush2.xpose.msra.mxu0 0.0
    %308 = vmatprep.subr.mxu0 0.0
    %309 = vmatpush2.xpose.msra.mxu0 0.0
    %310 = vmatprep.subr.mxu0 0.0
    %311 = vmatpush2.xpose.msra.mxu0 0.0
    %312 = vmatprep.subr.mxu0 0.0
    %313 = vmatpush2.xpose.msra.mxu0 0.0
    %314 = vmatprep.subr.mxu0 0.0
    %315 = vmatpush2.xpose.msra.mxu0 0.0
    %316 = vmatprep.subr.mxu0 0.0
    %317 = vmatpush2.xpose.msra.mxu0 0.0
    %318 = vmatprep.subr.mxu0 0.0
    %319 = vmatpush2.xpose.msra.mxu0 0.0
    %320 = vmatprep.subr.mxu0 0.0
    %321 = vmatpush2.xpose.msra.mxu0 0.0
    %322 = vmatprep.subr.mxu0 0.0
    %323 = vmatpush2.xpose.msra.mxu0 0.0
    %324 = vmatprep.subr.mxu0 0.0
    %325 = vmatpush2.xpose.msra.mxu0 0.0
    %326 = vmatprep.mubr.f32.mxu0 0.0
    %327 = vmatmul.mubr.f32.gmra.mxu0 %v254
    %v328 = vpop.f32.mrf.mxu0
    %v329 = vadd.f32 0.0, %v328
    %v330 = vpop.f32.mrf.mxu0
    %331 = vmatprep.mubr.f32.mxu0 0.0
    %332 = vmatmul.mubr.f32.gmra.mxu0 %v257
    %v333 = vpop.f32.mrf.mxu0
    %v334 = vadd.f32 0.0, %v333
    %v335 = vpop.f32.mrf.mxu0
    %336 = vdwg.mxu0
    %vm337 = vcmask 31744
    %v338 = vsel %vm337, %v329, -inf
    %339 = vmax.xlane.f32.xlu0 %v338
    %v340 = vpop.xlane.xlu0 %339
    %v341 = vsel %vm337, %v334, -inf
    %342 = vmax.xlane.f32.xlu0 %v341
    %v343 = vpop.xlane.xlu0 %342
    %v344 = vsub.f32 %v329, %v340
    %v345 = vsub.f32 %v334, %v343
    %v346 = vmul.f32 %v344, 1.442695
    %v347 = vpow.pop %v346
    %v348 = vmul.f32 %v345, 1.442695
    %v349 = vpow.pop %v348
    %v350 = vsel %vm337, %v347, 0.0
    %351 = vadd.xlane.f32.xlu0 %v350
    %v352 = vpop.xlane.xlu0 %351
    %v353 = vsel %vm337, %v349, 0.0
    %354 = vadd.xlane.f32.xlu0 %v353
    %v355 = vpop.xlane.xlu0 %354
    %v356 = vrcp.pop %v352
    %v357 = vrcp.pop %v355
    %v358 = vmul.f32 %v347, %v356
    %v359 = vmul.f32 %v349, %v357
    %360 = vst.msk [vmem:[%s6] sm:$0xff] %vm337, %v358
    %361 = vst.msk [vmem:[%s6 + $0x8] sm:$0xff] %vm337, %v359
    // Predicated region
    $region38: #{tpu_custom_call.1} parent=1 // pred_check
      _
    $region39: #{tpu_custom_call.1} parent=1 // pred_check_branch
      %363 = sbr.rel (0) target = $region41
    $region40: #{tpu_custom_call.1} parent=1 // pred_region
      _
    $region41: #{tpu_custom_call.1} parent=1 // pred_fallthru
      _
    // Predicated region
    $region42: #{tpu_custom_call.1} parent=1 // pred_check
      _
    $region43: #{tpu_custom_call.1} parent=1 // pred_check_branch
      %365 = sbr.rel (0) target = $region45
    $region44: #{tpu_custom_call.1} parent=1 // pred_region
      _
    $region45: #{tpu_custom_call.1} parent=1 // pred_fallthru
      _
    %366 = vsyncpa [#allocation3], 1
    %367 = vsyncpa [#allocation5], 1

</llo_original>
